<compile_context>
chip_gen: v5e
topology: v5e:2x2
jax: 0.10.0
libtpu: 0.0.40
codegen_flags: <defaults>
</compile_context>

<pallas_src>
import functools
import math

import jax
import jax.numpy as jnp
from jax.experimental import pallas as pl
from jax.experimental.pallas import tpu as pltpu

BN_EPS = 1e-5
LANE = 128
SUBLANE = 8


def autopad(k, p=None, d=1):
    if d > 1:
        k = d * (k - 1) + 1 if isinstance(k, int) else [d * (x - 1) + 1 for x in k]
    if p is None:
        p = k // 2 if isinstance(k, int) else [x // 2 for x in k]
    return p


def _round_up(x, m):
    return (x + m - 1) // m * m


def _padded_vmem_bytes(shape, dtype):
    """Rough VMEM footprint of one tile (last two dims padded to (8,128))."""
    s = list(shape)
    if len(s) >= 1:
        s[-1] = _round_up(int(s[-1]), LANE)
    if len(s) >= 2:
        s[-2] = _round_up(int(s[-2]), SUBLANE)
    n = 1
    for dd in s:
        n *= int(dd)
    return n * jnp.dtype(dtype).itemsize


# ---------------- Pass 1: in-kernel im2col + conv matmul + partial stats -----
def _conv_stats_kernel(x_ref, halo_ref, w_ref, conv_ref, psum_ref, psumsq_ref,
                       *, K, th, Wo):
    # x_ref:    (1, th,   Wp, C1) bf16  -- this tile's padded input rows
    # halo_ref: (1, halo, Wp, C1) bf16  -- next K-1 padded rows (bottom halo)
    # w_ref:    (K*K*C1, C2p)     bf16  -- filters, row order (kh, kw, ci)
    # conv_ref: (th*Wo, C2p)      bf16  -- conv output tile, rows = (row, col)
    x = x_ref[0]                                        # [th, Wp, C1]
    halo = halo_ref[0]                                  # [halo, Wp, C1]
    window = jnp.concatenate([x, halo], axis=0)         # [th + halo, Wp, C1]

    # In-kernel im2col: K*K statically shifted views of the halo'd slab.
    taps = []
    for kh in range(K):
        for kw in range(K):
            taps.append(window[kh:kh + th, kw:kw + Wo, :])   # [th, Wo, C1]
    patch = jnp.concatenate(taps, axis=-1)                   # [th, Wo, K*K*C1]
    # Leading-dim collapse (free when Wo % 8 == 0; otherwise a relayout copy).
    patch = patch.reshape(th * Wo, patch.shape[-1])          # [rows, K*K*C1]

    conv = jnp.dot(patch, w_ref[...], preferred_element_type=jnp.float32)
    conv_ref[...] = conv.astype(conv_ref.dtype)              # bf16 intermediate

    # Per-tile partial sums from the f32 accumulator (padded rows/channels are 0).
    s = jnp.sum(conv, axis=0, keepdims=True)                 # [1, C2p]
    ss = jnp.sum(conv * conv, axis=0, keepdims=True)         # [1, C2p]
    c2p = s.shape[-1]
    psum_ref[...] = jnp.broadcast_to(s[None], (1, SUBLANE, c2p))
    psumsq_ref[...] = jnp.broadcast_to(ss[None], (1, SUBLANE, c2p))


# ---------------- Pass 2: BatchNorm (folded scale/shift) + SiLU --------------
def _bn_silu_kernel(conv_ref, scale_ref, shift_ref, out_ref):
    y = conv_ref[...].astype(jnp.float32) * scale_ref[...] + shift_ref[...]
    out_ref[...] = (y * jax.nn.sigmoid(y)).astype(out_ref.dtype)


def conv_bn_silu(x_nchw, weight, gamma, beta, k, s=1, p=None, d=1, g=1,
                 rows_per_tile=None, channels_last=False):
    """x_nchw: [N, C1, H, W]; weight: [C2, C1, K, K] (PyTorch layout)."""
    assert s == 1 and d == 1 and g == 1, "only stride=1, dilation=1, groups=1 implemented"
    pad = autopad(k, p, d)
    N, C1, H, W = x_nchw.shape
    C2 = weight.shape[0]
    K = k

    Ho = H + 2 * pad - K + 1
    Wo = W + 2 * pad - K + 1
    Wp = W + 2 * pad
    KKC1 = K * K * C1                      # contraction depth (NOT padded to 128)
    # NOTE(v6e/v7x): if the layer becomes MXU-bound, rounding C2p to 256 fills the
    # 256x256 MXU better; 128 is optimal on v5e and wastes less for tiny C2.
    C2p = _round_up(C2, LANE)

    # --- output-row tiling (keep >= 2 grid steps so v7x's 2 TCs both work) ----
    if rows_per_tile is None:
        rows_per_tile = max(SUBLANE, 1024 // max(Wo, 1))
    th = max(1, min(int(rows_per_tile), Ho))
    th = max(th, K - 1)                    # the bottom halo must fit in one tile
    n_htiles = pl.cdiv(Ho, th)
    halo_rows = max(K - 1, 1)
    rows1 = th * Wo                        # conv rows produced per pass-1 step
    n_tiles = N * n_htiles
    Mt = n_tiles * rows1

    # --- input prep: NCHW -> NHWC bf16, pad H/W (raw input only, no im2col) ---
    x = jnp.transpose(x_nchw, (0, 2, 3, 1)).astype(jnp.bfloat16)     # [N,H,W,C1]
    h_total = (n_htiles + 1) * th          # room for the last tile's bottom halo
    xp = jnp.pad(x, ((0, 0), (pad, h_total - H - pad), (pad, pad), (0, 0)))
    x_main = xp[:, :n_htiles * th]                                   # [N, HT, Wp, C1]
    x_halo = xp.reshape(N, n_htiles + 1, th, Wp, C1)[:, 1:, :halo_rows]
    x_halo = x_halo.reshape(N * n_htiles, halo_rows, Wp, C1)         # per-tile halo rows

    # --- weights: [C2, C1, K, K] -> [(kh, kw, ci), C2p] bf16, lane-dense C2 ----
    w_mat = jnp.transpose(weight, (2, 3, 1, 0)).reshape(KKC1, C2)
    w_mat = jnp.pad(w_mat, ((0, 0), (0, C2p - C2))).astype(jnp.bfloat16)

    conv_dtype = jnp.bfloat16

    # --- pass-2 tiling: bigger streaming tiles (amortize per-step overhead) ---
    tiles_per_step = 1
    for cand in range(n_tiles, 0, -1):
        if n_tiles % cand:
            continue
        if cand * rows1 <= 4096 and (n_tiles // cand >= 2 or n_tiles == 1):
            tiles_per_step = cand
            break
    tm2 = tiles_per_step * rows1
    n_steps2 = n_tiles // tiles_per_step

    # --- VMEM budget from the actual tiles (cap 40 MiB: safe on v7x's 64 MiB) --
    p1_blocks = (
        _padded_vmem_bytes((1, th, Wp, C1), jnp.bfloat16)
        + _padded_vmem_bytes((1, halo_rows, Wp, C1), jnp.bfloat16)
        + _padded_vmem_bytes((KKC1, C2p), jnp.bfloat16)
        + _padded_vmem_bytes((rows1, C2p), conv_dtype)
        + 2 * _padded_vmem_bytes((1, SUBLANE, C2p), jnp.float32)
    )
    p1_scratch = (
        _padded_vmem_bytes((th + halo_rows, Wp, C1), jnp.bfloat16)
        + 2 * _padded_vmem_bytes((rows1, KKC1), jnp.bfloat16)
        + 2 * _padded_vmem_bytes((rows1, C2p), jnp.float32)
    )
    vmem1 = 2 * p1_blocks + p1_scratch
    vmem2 = 2 * (_padded_vmem_bytes((tm2, C2p), conv_dtype)
                 + _padded_vmem_bytes((tm2, C2p), jnp.float32)
                 + 2 * _padded_vmem_bytes((1, C2p), jnp.float32))
    vmem_budget = int(min(max(1.5 * max(vmem1, vmem2) + (4 << 20), 16 << 20), 40 << 20))

    cparams1 = pltpu.CompilerParams(
        dimension_semantics=("parallel", "parallel"), vmem_limit_bytes=vmem_budget)
    cparams2 = pltpu.CompilerParams(
        dimension_semantics=("parallel",), vmem_limit_bytes=vmem_budget)

    # ---- Pass 1: conv + per-tile partial stats --------------------------------
    kernel1 = functools.partial(_conv_stats_kernel, K=K, th=th, Wo=Wo)
    conv, psum, psumsq = pl.pallas_call(
        kernel1,
        out_shape=(
            jax.ShapeDtypeStruct((Mt, C2p), conv_dtype),
            jax.ShapeDtypeStruct((n_tiles, SUBLANE, C2p), jnp.float32),
            jax.ShapeDtypeStruct((n_tiles, SUBLANE, C2p), jnp.float32),
        ),
        grid_spec=pltpu.PrefetchScalarGridSpec(
            num_scalar_prefetch=0,
            grid=(N, n_htiles),
            in_specs=[
                pl.BlockSpec((1, th, Wp, C1), lambda n, hb: (n, hb, 0, 0)),
                pl.BlockSpec((1, halo_rows, Wp, C1),
                             lambda n, hb: (n * n_htiles + hb, 0, 0, 0)),
                pl.BlockSpec((KKC1, C2p), lambda n, hb: (0, 0)),
            ],
            out_specs=(
                pl.BlockSpec((rows1, C2p), lambda n, hb: (n * n_htiles + hb, 0)),
                pl.BlockSpec((1, SUBLANE, C2p), lambda n, hb: (n * n_htiles + hb, 0, 0)),
                pl.BlockSpec((1, SUBLANE, C2p), lambda n, hb: (n * n_htiles + hb, 0, 0)),
            ),
        ),
        compiler_params=cparams1,
    )(x_main, x_halo, w_mat)

    # ---- Host combine: exact global batch statistics (biased variance) --------
    m_count = N * Ho * Wo
    total = jnp.sum(psum[:, 0, :], axis=0)            # [C2p]
    total_sq = jnp.sum(psumsq[:, 0, :], axis=0)       # [C2p]
    mean = total / m_count
    var = jnp.maximum(total_sq / m_count - mean * mean, 0.0)
    gamma_p = jnp.pad(gamma.astype(jnp.float32), (0, C2p - C2))
    beta_p = jnp.pad(beta.astype(jnp.float32), (0, C2p - C2))
    inv = jax.lax.rsqrt(var + BN_EPS)
    scale = (gamma_p * inv).reshape(1, C2p)
    shift = (beta_p - mean * gamma_p * inv).reshape(1, C2p)

    # ---- Pass 2: elementwise BN + SiLU over the bf16 conv tiles ----------------
    out = pl.pallas_call(
        _bn_silu_kernel,
        out_shape=jax.ShapeDtypeStruct((Mt, C2p), jnp.float32),
        grid_spec=pltpu.PrefetchScalarGridSpec(
            num_scalar_prefetch=0,
            grid=(n_steps2,),
            in_specs=[
                pl.BlockSpec((tm2, C2p), lambda i: (i, 0)),
                pl.BlockSpec((1, C2p), lambda i: (0, 0)),
                pl.BlockSpec((1, C2p), lambda i: (0, 0)),
            ],
            out_specs=pl.BlockSpec((tm2, C2p), lambda i: (i, 0)),
        ),
        compiler_params=cparams2,
    )(conv, scale, shift)

    # [Mt, C2p] -> [N, Ho, Wo, C2] (tile-order rows reassemble directly into NHWC)
    out = out.reshape(N, n_htiles * th, Wo, C2p)[:, :Ho, :, :C2]
    if channels_last:
        return out                                   # NHWC: skips the transpose pass
    return jnp.transpose(out, (0, 3, 1, 2))          # NCHW to match the PyTorch module


def _reference(x_nchw, weight, gamma, beta, k, p=None):
    pad = autopad(k, p, 1)
    conv = jax.lax.conv_general_dilated(
        x_nchw.astype(jnp.float32), weight.astype(jnp.float32),
        window_strides=(1, 1), padding=[(pad, pad), (pad, pad)],
        dimension_numbers=("NCHW", "OIHW", "NCHW"))
    mean = jnp.mean(conv, axis=(0, 2, 3), keepdims=True)
    var = jnp.mean((conv - mean) ** 2, axis=(0, 2, 3), keepdims=True)
    y = (conv - mean) * jax.lax.rsqrt(var + BN_EPS)
    y = y * gamma.reshape(1, -1, 1, 1) + beta.reshape(1, -1, 1, 1)
    return y * jax.nn.sigmoid(y)


if __name__ == "__main__":
    # Module config: Conv(dim=2, c1=4, c2=8, k=3) -> pad=1, stride=1, SiLU act
    N, C1, C2, H, W, K = 2, 4, 8, 16, 16, 3

    key = jax.random.PRNGKey(0)
    kx, kw, kg, kb = jax.random.split(key, 4)

    x = jax.random.normal(kx, (N, C1, H, W), dtype=jnp.float32)
    fan_in = C1 * K * K
    bound = 1.0 / math.sqrt(fan_in)
    weight = jax.random.uniform(kw, (C2, C1, K, K), minval=-bound, maxval=bound,
                                dtype=jnp.float32)
    gamma = 1.0 + 0.1 * jax.random.normal(kg, (C2,), dtype=jnp.float32)
    beta = 0.1 * jax.random.normal(kb, (C2,), dtype=jnp.float32)

    # rows_per_tile=8 -> grid (N=2, h-tiles=2): 4 pipelined pass-1 steps.
    out = conv_bn_silu(x, weight, gamma, beta, k=K, rows_per_tile=8)
    out = jax.block_until_ready(out)

    ref = jax.block_until_ready(_reference(x, weight, gamma, beta, k=K))
    assert out.shape == (N, C2, H, W)
    max_err = float(jnp.max(jnp.abs(out - ref)))
    assert jnp.allclose(out, ref, atol=2e-2, rtol=2e-2), f"mismatch vs reference (max err {max_err})"

    print("KERNEL_OK")
</pallas_src>

<mosaic_0001>
module attributes {stable_mosaic.version = 11 : i64} {
  func.func @_conv_stats_kernel(%arg0: i32, %arg1: i32, %arg2: memref<1x8x18x4xbf16, #tpu.memory_space<vmem>>, %arg3: memref<1x2x18x4xbf16, #tpu.memory_space<vmem>>, %arg4: memref<36x128xbf16, #tpu.memory_space<vmem>>, %arg5: memref<128x128xbf16, #tpu.memory_space<vmem>>, %arg6: memref<1x8x128xf32, #tpu.memory_space<vmem>>, %arg7: memref<1x8x128xf32, #tpu.memory_space<vmem>>) attributes {dimension_semantics = [#tpu.dimension_semantics<parallel>, #tpu.dimension_semantics<parallel>], iteration_bounds = array<i64: 2, 2>, scalar_prefetch = 0 : i64, scratch_operands = 0 : i64, tpu.core_type = #tpu.core_type<tc>, window_params = [{transform_indices = @transform_0, window_bounds = array<i64: 1, 8, 18, 4>}, {transform_indices = @transform_1, window_bounds = array<i64: 1, 2, 18, 4>}, {pipeline_mode = #tpu.pipeline_mode<synchronous>, transform_indices = @transform_2, window_bounds = array<i64: 36, 128>}, {transform_indices = @transform_3, window_bounds = array<i64: 128, 128>}, {transform_indices = @transform_4, window_bounds = array<i64: 1, 8, 128>}, {transform_indices = @transform_5, window_bounds = array<i64: 1, 8, 128>}]} {
    %c0 = arith.constant 0 : index
    %c0_0 = arith.constant 0 : index
    %c0_1 = arith.constant 0 : index
    %c0_2 = arith.constant 0 : index
    %0 = vector.load %arg2[%c0, %c0_0, %c0_1, %c0_2] : memref<1x8x18x4xbf16, #tpu.memory_space<vmem>>, vector<1x8x18x4xbf16>
    %1 = vector.shape_cast %0 : vector<1x8x18x4xbf16> to vector<8x18x4xbf16>
    %c0_3 = arith.constant 0 : index
    %c0_4 = arith.constant 0 : index
    %c0_5 = arith.constant 0 : index
    %c0_6 = arith.constant 0 : index
    %2 = vector.load %arg3[%c0_3, %c0_4, %c0_5, %c0_6] : memref<1x2x18x4xbf16, #tpu.memory_space<vmem>>, vector<1x2x18x4xbf16>
    %3 = vector.shape_cast %2 : vector<1x2x18x4xbf16> to vector<2x18x4xbf16>
    %4 = tpu.concatenate %1, %3 in 0 : vector<8x18x4xbf16>, vector<2x18x4xbf16> -> vector<10x18x4xbf16>
    %5 = vector.extract_strided_slice %4 {offsets = [0, 0, 0], sizes = [8, 16, 4], strides = [1, 1, 1]} : vector<10x18x4xbf16> to vector<8x16x4xbf16>
    %6 = vector.extract_strided_slice %4 {offsets = [0, 1, 0], sizes = [8, 16, 4], strides = [1, 1, 1]} : vector<10x18x4xbf16> to vector<8x16x4xbf16>
    %7 = vector.extract_strided_slice %4 {offsets = [0, 2, 0], sizes = [8, 16, 4], strides = [1, 1, 1]} : vector<10x18x4xbf16> to vector<8x16x4xbf16>
    %8 = vector.extract_strided_slice %4 {offsets = [1, 0, 0], sizes = [8, 16, 4], strides = [1, 1, 1]} : vector<10x18x4xbf16> to vector<8x16x4xbf16>
    %9 = vector.extract_strided_slice %4 {offsets = [1, 1, 0], sizes = [8, 16, 4], strides = [1, 1, 1]} : vector<10x18x4xbf16> to vector<8x16x4xbf16>
    %10 = vector.extract_strided_slice %4 {offsets = [1, 2, 0], sizes = [8, 16, 4], strides = [1, 1, 1]} : vector<10x18x4xbf16> to vector<8x16x4xbf16>
    %11 = vector.extract_strided_slice %4 {offsets = [2, 0, 0], sizes = [8, 16, 4], strides = [1, 1, 1]} : vector<10x18x4xbf16> to vector<8x16x4xbf16>
    %12 = vector.extract_strided_slice %4 {offsets = [2, 1, 0], sizes = [8, 16, 4], strides = [1, 1, 1]} : vector<10x18x4xbf16> to vector<8x16x4xbf16>
    %13 = vector.extract_strided_slice %4 {offsets = [2, 2, 0], sizes = [8, 16, 4], strides = [1, 1, 1]} : vector<10x18x4xbf16> to vector<8x16x4xbf16>
    %14 = tpu.concatenate %5, %6, %7, %8, %9, %10, %11, %12, %13 in 2 : vector<8x16x4xbf16>, vector<8x16x4xbf16>, vector<8x16x4xbf16>, vector<8x16x4xbf16>, vector<8x16x4xbf16>, vector<8x16x4xbf16>, vector<8x16x4xbf16>, vector<8x16x4xbf16>, vector<8x16x4xbf16> -> vector<8x16x36xbf16>
    %15 = vector.shape_cast %14 : vector<8x16x36xbf16> to vector<128x36xbf16>
    %c0_7 = arith.constant 0 : index
    %c0_8 = arith.constant 0 : index
    %16 = vector.load %arg4[%c0_7, %c0_8] : memref<36x128xbf16, #tpu.memory_space<vmem>>, vector<36x128xbf16>
    %cst = arith.constant dense<0.000000e+00> : vector<128x128xf32>
    %17 = tpu.matmul %15, %16, %cst {dimension_numbers = #tpu.dot_dimension_numbers<[1], [0], [0], [1], [0, 0, 1, 1], [], []>} : vector<128x36xbf16>, vector<36x128xbf16>, vector<128x128xf32> -> vector<128x128xf32>
    %18 = arith.truncf %17 : vector<128x128xf32> to vector<128x128xbf16>
    %c0_9 = arith.constant 0 : index
    %c0_10 = arith.constant 0 : index
    %19 = vector.load %arg5[%c0_9, %c0_10] : memref<128x128xbf16, #tpu.memory_space<vmem>>, vector<128x128xbf16>
    tpu.vector_store %arg5[%c0_9, %c0_10], %18 {strides = array<i32>} : memref<128x128xbf16, #tpu.memory_space<vmem>>, vector<128x128xbf16>,
    %cst_11 = arith.constant dense<0.000000e+00> : vector<128xf32>
    %20 = vector.multi_reduction <add>, %17, %cst_11 [0] : vector<128x128xf32> to vector<128xf32>
    %21 = vector.shape_cast %20 : vector<128xf32> to vector<1x128xf32>
    %22 = arith.mulf %17, %17 : vector<128x128xf32>
    %cst_12 = arith.constant dense<0.000000e+00> : vector<128xf32>
    %23 = vector.multi_reduction <add>, %22, %cst_12 [0] : vector<128x128xf32> to vector<128xf32>
    %24 = vector.shape_cast %23 : vector<128xf32> to vector<1x128xf32>
    %25 = vector.shape_cast %21 : vector<1x128xf32> to vector<1x1x128xf32>
    %26 = vector.shape_cast %25 : vector<1x1x128xf32> to vector<1x1x128xf32>
    %27 = vector.broadcast %26 : vector<1x1x128xf32> to vector<1x8x128xf32>
    %c0_13 = arith.constant 0 : index
    %c0_14 = arith.constant 0 : index
    %c0_15 = arith.constant 0 : index
    %28 = vector.load %arg6[%c0_13, %c0_14, %c0_15] : memref<1x8x128xf32, #tpu.memory_space<vmem>>, vector<1x8x128xf32>
    tpu.vector_store %arg6[%c0_13, %c0_14, %c0_15], %27 {strides = array<i32>} : memref<1x8x128xf32, #tpu.memory_space<vmem>>, vector<1x8x128xf32>,
    %29 = vector.shape_cast %24 : vector<1x128xf32> to vector<1x1x128xf32>
    %30 = vector.shape_cast %29 : vector<1x1x128xf32> to vector<1x1x128xf32>
    %31 = vector.broadcast %30 : vector<1x1x128xf32> to vector<1x8x128xf32>
    %c0_16 = arith.constant 0 : index
    %c0_17 = arith.constant 0 : index
    %c0_18 = arith.constant 0 : index
    %32 = vector.load %arg7[%c0_16, %c0_17, %c0_18] : memref<1x8x128xf32, #tpu.memory_space<vmem>>, vector<1x8x128xf32>
    tpu.vector_store %arg7[%c0_16, %c0_17, %c0_18], %31 {strides = array<i32>} : memref<1x8x128xf32, #tpu.memory_space<vmem>>, vector<1x8x128xf32>,
    return
  }
  func.func @transform_0(%arg0: i32, %arg1: i32) -> (i32, i32, i32, i32) {
    %c0_i32 = arith.constant 0 : i32
    %c0_i32_0 = arith.constant 0 : i32
    %c0_i32_1 = arith.constant 0 : i32
    return %arg0, %arg1, %c0_i32, %c0_i32_0 : i32, i32, i32, i32
  }
  func.func @transform_1(%arg0: i32, %arg1: i32) -> (i32, i32, i32, i32) {
    %c2_i32 = arith.constant 2 : i32
    %0 = arith.muli %arg0, %c2_i32 : i32
    %1 = arith.addi %0, %arg1 : i32
    %c0_i32 = arith.constant 0 : i32
    %c0_i32_0 = arith.constant 0 : i32
    %c0_i32_1 = arith.constant 0 : i32
    %c0_i32_2 = arith.constant 0 : i32
    return %1, %c0_i32, %c0_i32_0, %c0_i32_1 : i32, i32, i32, i32
  }
  func.func @transform_2(%arg0: i32, %arg1: i32) -> (i32, i32) {
    %c0_i32 = arith.constant 0 : i32
    %c0_i32_0 = arith.constant 0 : i32
    %c0_i32_1 = arith.constant 0 : i32
    return %c0_i32, %c0_i32_0 : i32, i32
  }
  func.func @transform_3(%arg0: i32, %arg1: i32) -> (i32, i32) {
    %c2_i32 = arith.constant 2 : i32
    %0 = arith.muli %arg0, %c2_i32 : i32
    %1 = arith.addi %0, %arg1 : i32
    %c0_i32 = arith.constant 0 : i32
    %c0_i32_0 = arith.constant 0 : i32
    return %1, %c0_i32 : i32, i32
  }
  func.func @transform_4(%arg0: i32, %arg1: i32) -> (i32, i32, i32) {
    %c2_i32 = arith.constant 2 : i32
    %0 = arith.muli %arg0, %c2_i32 : i32
    %1 = arith.addi %0, %arg1 : i32
    %c0_i32 = arith.constant 0 : i32
    %c0_i32_0 = arith.constant 0 : i32
    %c0_i32_1 = arith.constant 0 : i32
    return %1, %c0_i32, %c0_i32_0 : i32, i32, i32
  }
  func.func @transform_5(%arg0: i32, %arg1: i32) -> (i32, i32, i32) {
    %c2_i32 = arith.constant 2 : i32
    %0 = arith.muli %arg0, %c2_i32 : i32
    %1 = arith.addi %0, %arg1 : i32
    %c0_i32 = arith.constant 0 : i32
    %c0_i32_0 = arith.constant 0 : i32
    %c0_i32_1 = arith.constant 0 : i32
    return %1, %c0_i32, %c0_i32_0 : i32, i32, i32
  }
}

</mosaic_0001>

<llo_original>
// kernel: tpu_custom_call.1
$region0: #{tpu_custom_call.1}
  #allocation0 [shape = 'u32[]', space=smem, size = 0x4, offset = 0x4, fixed_abs, tag = 'smem constant byte address 0x4 - core index']
  #allocation1 [shape = 'u32[72,128]{1,0:T(1,128)}', space=vmem, size = 0x9000, scoped, tag = 'internal scratch']
  %s0 = inlined_call_operand.vmem [shape: bf16[2,16,18,4], index: 0, kind: input, shape index: {}]
  %s1 = inlined_call_operand.vmem [shape: bf16[4,2,18,4], index: 1, kind: input, shape index: {}]
  %s2 = inlined_call_operand.vmem [shape: bf16[36,128], index: 2, kind: input, shape index: {}]
  %s3 = inlined_call_operand.hbm [shape: bf16[512,128], index: 3, kind: output, shape index: {0}]
  %s4 = inlined_call_operand.hbm [shape: f32[4,8,128], index: 4, kind: output, shape index: {1}]
  %s5 = inlined_call_operand.hbm [shape: f32[4,8,128], index: 5, kind: output, shape index: {2}]
  %6 = xla_tuple %s3, %s4, %s5
  %s7 = sld [smem:[#allocation0]]
  $region61: #{tpu_custom_call.1} parent=0
    _
  %s9 = ssub.s32 1, %s7
  %s10 = scalar_select 0, %s9, %s7
  $region1: #{tpu_custom_call.1} parent=0
    #allocation2 [shape = 'u8[65536]{0}', space=vmem, size = 0x10000, scoped, tag = 'output window, operand 0']
    #allocation3 [shape = 's32[2]{0}', space=sflag, size = 0x8, scoped, tag = 'scoped memory for tpu_custom_call.1']
    #allocation4 [shape = 'u8[8192]{0}', space=vmem, size = 0x2000, scoped, tag = 'output window, operand 1']
    #allocation5 [shape = 's32[2]{0}', space=sflag, size = 0x8, scoped, tag = 'scoped memory for tpu_custom_call.1']
    #allocation6 [shape = 'u8[8192]{0}', space=vmem, size = 0x2000, scoped, tag = 'output window, operand 2']
    %11 = vsyncpa [#allocation3], 0
    %s12 = scalar_lea.sflag [#allocation3], 1
    %13 = vsyncpa %s12, 0
    %14 = vsyncpa [#allocation5], 0
    %s15 = scalar_lea.sflag [#allocation5], 1
    %16 = vsyncpa %s15, 0
    loop: start=0, step=1, limit=6
    $region2: #{tpu_custom_call.1} parent=1 // loop_pre_header
      _
    $region3: #{tpu_custom_call.1} parent=1 // loop_header
      %s18 = sphi 0, %s22
      %p19 = scmp.ge.s32.totalorder %s18, 6
      %s25 = sphi 0, %s37
      %s26 = sphi 0, %s33
      %s27 = sphi 0, %s25
      %s28 = sphi 0, %s26
      %s29 = sphi 0, %s27
      %s30 = sphi 0, %s28
      %s42 = sphi 0, %s44
      %s45 = sphi 0, %s42
      %s46 = sphi 0, %s45
      %s62 = sphi 0, %s46
      %s72 = sphi 0, %s74
      %s75 = sphi 0, %s72
      %s76 = sphi 0, %s75
      %s92 = sphi 0, %s76
      %s96 = sphi 0, %s96
      %s98 = sphi 0, %s96
      %s99 = sphi 0, %s98
      %s113 = sphi 0, %s99
      %s123 = sphi 0, %s125
      %s126 = sphi 0, %s123
      %s127 = sphi 0, %s126
      %s143 = sphi 0, %s127
      %s153 = sphi 0, %s155
      %s156 = sphi 0, %s153
      %s157 = sphi 0, %s156
      %s173 = sphi 0, %s157
      %s183 = sphi 0, %s185
      %s186 = sphi 0, %s183
      %s187 = sphi 0, %s186
      %s203 = sphi 0, %s187
    $region4: #{tpu_custom_call.1} parent=1 // loop_header_branch
      %21 = sbr.rel (%p19) target = $region8
    $region5: #{tpu_custom_call.1} parent=1 // loop_body
      %s23 = ssub.s32 %s18, 1
      %s24 = ssub.s32 %s18, 2
      %s31 = sadd.s32 1, %s26
      %p32 = scmp.ge.s32.totalorder %s31, 2
      %s33 = scalar_select %p32, 0, %s31
      %s34 = sadd.s32 1, %s25
      %s35 = scalar_select %p32, %s34, %s25
      %p36 = scmp.ge.s32.totalorder %s35, 2
      %s37 = scalar_select %p36, 0, %s35
      %s38 = ssub.s32 %s25, %s37
      %s39 = ssub.s32 %s26, %s33
      %s40 = sor.u32 %s38, %s39
      %p41 = scmp.eq.s32.totalorder %s40, 0
      %s43 = sadd.s32 %s42, 1
      %s44 = scalar_select %p41, %s42, %s43
      %p47 = pneg %p41
      %p48 = scmp.eq.s32.totalorder %s18, 3
      %p49 = por %p47, %p48
      %p50 = scmp.ne.s32.totalorder %s42, %s45
      %p51 = scmp.eq.s32.totalorder %s18, 0
      %p52 = por %p50, %p51
      %p53 = scmp.ne.s32.totalorder %s42, %s45
      %p54 = scmp.eq.s32.totalorder %s23, 3
      %p55 = por %p53, %p54
      %p56 = scmp.ne.s32.totalorder %s45, %s46
      %p57 = scmp.eq.s32.totalorder %s23, 0
      %p58 = por %p56, %p57
      %p59 = scmp.ne.s32.totalorder %s45, %s46
      %p60 = scmp.eq.s32.totalorder %s24, 3
      %p61 = por %p59, %p60
      %p63 = scmp.ne.s32.totalorder %s46, %s62
      %p64 = scmp.eq.s32.totalorder %s24, 0
      %p65 = por %p63, %p64
      %s66 = smul.u32 %s25, 2
      %s67 = sadd.s32 %s66, %s26
      %s68 = smul.u32 %s37, 2
      %s69 = sadd.s32 %s68, %s33
      %s70 = ssub.s32 %s67, %s69
      %p71 = scmp.eq.s32.totalorder %s70, 0
      %s73 = sadd.s32 %s72, 1
      %s74 = scalar_select %p71, %s72, %s73
      %p77 = pneg %p71
      %p78 = scmp.eq.s32.totalorder %s18, 3
      %p79 = por %p77, %p78
      %p80 = scmp.ne.s32.totalorder %s72, %s75
      %p81 = scmp.eq.s32.totalorder %s18, 0
      %p82 = por %p80, %p81
      %p83 = scmp.ne.s32.totalorder %s72, %s75
      %p84 = scmp.eq.s32.totalorder %s23, 3
      %p85 = por %p83, %p84
      %p86 = scmp.ne.s32.totalorder %s75, %s76
      %p87 = scmp.eq.s32.totalorder %s23, 0
      %p88 = por %p86, %p87
      %p89 = scmp.ne.s32.totalorder %s75, %s76
      %p90 = scmp.eq.s32.totalorder %s24, 3
      %p91 = por %p89, %p90
      %p93 = scmp.ne.s32.totalorder %s76, %s92
      %p94 = scmp.eq.s32.totalorder %s24, 0
      %p95 = por %p93, %p94
      %s97 = sadd.s32 %s96, 1
      %p100 = scmp.eq.s32.totalorder %s18, 3
      %p101 = scmp.ne.s32.totalorder %s96, %s98
      %p102 = scmp.eq.s32.totalorder %s18, 0
      %p103 = por %p101, %p102
      %p104 = scmp.ne.s32.totalorder %s96, %s98
      %p105 = scmp.eq.s32.totalorder %s23, 3
      %p106 = por %p104, %p105
      %p107 = scmp.ne.s32.totalorder %s98, %s99
      %p108 = scmp.eq.s32.totalorder %s23, 0
      %p109 = por %p107, %p108
      %p110 = scmp.ne.s32.totalorder %s98, %s99
      %p111 = scmp.eq.s32.totalorder %s24, 3
      %p112 = por %p110, %p111
      %p114 = scmp.ne.s32.totalorder %s99, %s113
      %p115 = scmp.eq.s32.totalorder %s24, 0
      %p116 = por %p114, %p115
      %s117 = smul.u32 %s25, 2
      %s118 = sadd.s32 %s117, %s26
      %s119 = smul.u32 %s37, 2
      %s120 = sadd.s32 %s119, %s33
      %s121 = ssub.s32 %s118, %s120
      %p122 = scmp.eq.s32.totalorder %s121, 0
      %s124 = sadd.s32 %s123, 1
      %s125 = scalar_select %p122, %s123, %s124
      %p128 = pneg %p122
      %p129 = scmp.eq.s32.totalorder %s18, 3
      %p130 = por %p128, %p129
      %p131 = scmp.ne.s32.totalorder %s123, %s126
      %p132 = scmp.eq.s32.totalorder %s18, 0
      %p133 = por %p131, %p132
      %p134 = scmp.ne.s32.totalorder %s123, %s126
      %p135 = scmp.eq.s32.totalorder %s23, 3
      %p136 = por %p134, %p135
      %p137 = scmp.ne.s32.totalorder %s126, %s127
      %p138 = scmp.eq.s32.totalorder %s23, 0
      %p139 = por %p137, %p138
      %p140 = scmp.ne.s32.totalorder %s126, %s127
      %p141 = scmp.eq.s32.totalorder %s24, 3
      %p142 = por %p140, %p141
      %p144 = scmp.ne.s32.totalorder %s127, %s143
      %p145 = scmp.eq.s32.totalorder %s24, 0
      %p146 = por %p144, %p145
      %s147 = smul.u32 %s25, 2
      %s148 = sadd.s32 %s147, %s26
      %s149 = smul.u32 %s37, 2
      %s150 = sadd.s32 %s149, %s33
      %s151 = ssub.s32 %s148, %s150
      %p152 = scmp.eq.s32.totalorder %s151, 0
      %s154 = sadd.s32 %s153, 1
      %s155 = scalar_select %p152, %s153, %s154
      %p158 = pneg %p152
      %p159 = scmp.eq.s32.totalorder %s18, 3
      %p160 = por %p158, %p159
      %p161 = scmp.ne.s32.totalorder %s153, %s156
      %p162 = scmp.eq.s32.totalorder %s18, 0
      %p163 = por %p161, %p162
      %p164 = scmp.ne.s32.totalorder %s153, %s156
      %p165 = scmp.eq.s32.totalorder %s23, 3
      %p166 = por %p164, %p165
      %p167 = scmp.ne.s32.totalorder %s156, %s157
      %p168 = scmp.eq.s32.totalorder %s23, 0
      %p169 = por %p167, %p168
      %p170 = scmp.ne.s32.totalorder %s156, %s157
      %p171 = scmp.eq.s32.totalorder %s24, 3
      %p172 = por %p170, %p171
      %p174 = scmp.ne.s32.totalorder %s157, %s173
      %p175 = scmp.eq.s32.totalorder %s24, 0
      %p176 = por %p174, %p175
      %s177 = smul.u32 %s25, 2
      %s178 = sadd.s32 %s177, %s26
      %s179 = smul.u32 %s37, 2
      %s180 = sadd.s32 %s179, %s33
      %s181 = ssub.s32 %s178, %s180
      %p182 = scmp.eq.s32.totalorder %s181, 0
      %s184 = sadd.s32 %s183, 1
      %s185 = scalar_select %p182, %s183, %s184
      %p188 = pneg %p182
      %p189 = scmp.eq.s32.totalorder %s18, 3
      %p190 = por %p188, %p189
      %p191 = scmp.ne.s32.totalorder %s183, %s186
      %p192 = scmp.eq.s32.totalorder %s18, 0
      %p193 = por %p191, %p192
      %p194 = scmp.ne.s32.totalorder %s183, %s186
      %p195 = scmp.eq.s32.totalorder %s23, 3
      %p196 = por %p194, %p195
      %p197 = scmp.ne.s32.totalorder %s186, %s187
      %p198 = scmp.eq.s32.totalorder %s23, 0
      %p199 = por %p197, %p198
      %p200 = scmp.ne.s32.totalorder %s186, %s187
      %p201 = scmp.eq.s32.totalorder %s24, 3
      %p202 = por %p200, %p201
      %p204 = scmp.ne.s32.totalorder %s187, %s203
      %p205 = scmp.eq.s32.totalorder %s24, 0
      %p206 = por %p204, %p205
      %p207 = scmp.le.s32.totalorder 1, %s18
      %p208 = scmp.lt.s32.totalorder %s18, 5
      %p209 = pnand %p207, %p208
      %p210 = pneg %p209
      // Predicated region
      $region9: #{tpu_custom_call.1} parent=5 // pred_check
        _
      $region10: #{tpu_custom_call.1} parent=5 // pred_check_branch
        %212 = sbr.rel (%p209) target = $region12
      $region11: #{tpu_custom_call.1} parent=5 // pred_region
        %s213 = ssub.s32 %s18, 1
        // Predicated region
        $region13: #{tpu_custom_call.1} parent=11 // pred_check
          %p214 = pneg %p109
        $region14: #{tpu_custom_call.1} parent=11 // pred_check_branch
          %216 = sbr.rel (%p214) target = $region16
        $region15: #{tpu_custom_call.1} parent=11 // pred_region
          _
        $region16: #{tpu_custom_call.1} parent=11 // pred_fallthru
          _
      $region12: #{tpu_custom_call.1} parent=5 // pred_fallthru
        _
      %p217 = scmp.lt.s32.totalorder %s18, 4
      // Predicated region
      $region17: #{tpu_custom_call.1} parent=5 // pred_check
        %p218 = pneg %p217
      $region18: #{tpu_custom_call.1} parent=5 // pred_check_branch
        %220 = sbr.rel (%p218) target = $region20
      $region19: #{tpu_custom_call.1} parent=5 // pred_region
        // Predicated region
        $region21: #{tpu_custom_call.1} parent=19 // pred_check
          %p221 = pneg %p52
        $region22: #{tpu_custom_call.1} parent=19 // pred_check_branch
          %223 = sbr.rel (%p221) target = $region24
        $region23: #{tpu_custom_call.1} parent=19 // pred_region
          %s224 = smul.u32 8, %s26
          %p225 = scmp.lt.s32.totalorder %s25, 1
          %s226 = scalar_select %p225, %s25, 1
          %p227 = scmp.lt.s32.totalorder %s224, 15
          %s228 = scalar_select %p227, %s224, 15
          %s229 = smul.addr %s228, 3
          %s230 = smul.addr %s226, 48
          %s231 = sadd.s32 %s229, %s230
          %s232 = smul.addr %s231, 4
          %s233 = scalar_lea.vmem %s0, %s232
          %s234 = smul.u32 8, %s26
        $region24: #{tpu_custom_call.1} parent=19 // pred_fallthru
          _
        // Predicated region
        $region25: #{tpu_custom_call.1} parent=19 // pred_check
          %p235 = pneg %p82
        $region26: #{tpu_custom_call.1} parent=19 // pred_check_branch
          %237 = sbr.rel (%p235) target = $region28
        $region27: #{tpu_custom_call.1} parent=19 // pred_region
          %s238 = smul.u32 %s25, 2
          %s239 = sadd.s32 %s238, %s26
          %p240 = scmp.lt.s32.totalorder %s239, 3
          %s241 = scalar_select %p240, %s239, 3
          %s242 = smul.addr %s241, 6
          %s243 = smul.addr %s242, 4
          %s244 = scalar_lea.vmem %s1, %s243
          %s245 = smul.u32 %s25, 2
          %s246 = sadd.s32 %s245, %s26
        $region28: #{tpu_custom_call.1} parent=19 // pred_fallthru
          _
      $region20: #{tpu_custom_call.1} parent=5 // pred_fallthru
        _
      %p247 = scmp.le.s32.totalorder 1, %s18
      %p248 = scmp.lt.s32.totalorder %s18, 5
      %p249 = pnand %p247, %p248
      %p250 = pneg %p249
      // Predicated region
      $region29: #{tpu_custom_call.1} parent=5 // pred_check
        _
      $region30: #{tpu_custom_call.1} parent=5 // pred_check_branch
        %252 = sbr.rel (%p249) target = $region32
      $region31: #{tpu_custom_call.1} parent=5 // pred_region
        %s253 = ssub.s32 %s18, 1
        %s254 = smul.u32 8, %s28
        %p255 = scmp.lt.s32.totalorder %s27, 1
        %s256 = scalar_select %p255, %s27, 1
        %p257 = scmp.lt.s32.totalorder %s254, 15
        %s258 = scalar_select %p257, %s254, 15
        %s259 = smul.addr %s258, 3
        %s260 = smul.addr %s256, 48
        %s261 = sadd.s32 %s259, %s260
        %s262 = smul.addr %s261, 4
        %s263 = scalar_lea.vmem %s0, %s262
        %p264 = pneg %p58
        %p265 = pneg %p55
        %s266 = smul.u32 %s27, 2
        %s267 = sadd.s32 %s266, %s28
        %p268 = scmp.lt.s32.totalorder %s267, 3
        %s269 = scalar_select %p268, %s267, 3
        %s270 = smul.addr %s269, 6
        %s271 = smul.addr %s270, 4
        %s272 = scalar_lea.vmem %s1, %s271
        %p273 = pneg %p88
        %p274 = pneg %p85
        %p275 = pneg %p109
        %p276 = pneg %p106
        %p277 = pneg %p139
        %p278 = pneg %p136
        %s279 = sand.u32 %s126, 1
        %s280 = scalar_lea.sflag [#allocation3], %s279
        %s281 = sand.u32 %s126, 1
        %s282 = smul.addr %s281, 64
        %s283 = scalar_lea.vmem [#allocation2], %s282
        %p284 = pneg %p169
        %p285 = pneg %p166
        %s286 = sand.u32 %s23, 1
        %s287 = scalar_lea.sflag [#allocation5], %s286
        %s288 = sand.u32 %s156, 1
        %s289 = smul.addr %s288, 8
        %s290 = scalar_lea.vmem [#allocation4], %s289
        %p291 = pneg %p199
        %p292 = pneg %p196
        %s293 = sand.u32 %s23, 1
        %s294 = scalar_lea.sflag [#allocation5], %s293
        %s295 = sand.u32 %s186, 1
        %s296 = smul.addr %s295, 8
        %s297 = scalar_lea.vmem [#allocation6], %s296
        %s298 = smul.u32 8, %s28
        %p299 = scmp.lt.s32.totalorder %s27, 1
        %s300 = scalar_select %p299, %s27, 1
        %p301 = scmp.lt.s32.totalorder %s298, 15
        %s302 = scalar_select %p301, %s298, 15
        %s303 = smul.addr %s302, 3
        %s304 = smul.addr %s300, 48
        %s305 = sadd.s32 %s303, %s304
        %s306 = smul.addr %s305, 4
        %s307 = scalar_lea.vmem %s0, %s306
        %s308 = smul.u32 8, %s28
        %s309 = smul.u32 %s27, 2
        %s310 = sadd.s32 %s309, %s28
        %p311 = scmp.lt.s32.totalorder %s310, 3
        %s312 = scalar_select %p311, %s310, 3
        %s313 = smul.addr %s312, 6
        %s314 = smul.addr %s313, 4
        %s315 = scalar_lea.vmem %s1, %s314
        %s316 = smul.u32 %s27, 2
        %s317 = sadd.s32 %s316, %s28
        %s318 = smul.u32 %s27, 2
        %s319 = sadd.s32 %s318, %s28
        %s320 = smul.u32 16, %s319
        %s321 = smul.u32 %s27, 2
        %s322 = sadd.s32 %s321, %s28
        %s323 = smul.u32 %s27, 2
        %s324 = sadd.s32 %s323, %s28
        %v326 = vld [vmem:[%s307] sm:$0xf]
        %v327 = vld [vmem:[%s307 + $0x4] sm:$0xf]
        %v328 = vld [vmem:[%s307 + $0x8] sm:$0x1]
        %v329 = vld [vmem:[%s307 + $0xc] sm:$0xf]
        %v330 = vld [vmem:[%s307 + $0x10] sm:$0xf]
        %v331 = vld [vmem:[%s307 + $0x14] sm:$0x1]
        %v332 = vld [vmem:[%s307 + $0x18] sm:$0xf]
        %v333 = vld [vmem:[%s307 + $0x1c] sm:$0xf]
        %v334 = vld [vmem:[%s307 + $0x20] sm:$0x1]
        %v335 = vld [vmem:[%s307 + $0x24] sm:$0xf]
        %v336 = vld [vmem:[%s307 + $0x28] sm:$0xf]
        %v337 = vld [vmem:[%s307 + $0x2c] sm:$0x1]
        %v338 = vld [vmem:[%s307 + $0x30] sm:$0xf]
        %v339 = vld [vmem:[%s307 + $0x34] sm:$0xf]
        %v340 = vld [vmem:[%s307 + $0x38] sm:$0x1]
        %v341 = vld [vmem:[%s307 + $0x3c] sm:$0xf]
        %v342 = vld [vmem:[%s307 + $0x40] sm:$0xf]
        %v343 = vld [vmem:[%s307 + $0x44] sm:$0x1]
        %v344 = vld [vmem:[%s307 + $0x48] sm:$0xf]
        %v345 = vld [vmem:[%s307 + $0x4c] sm:$0xf]
        %v346 = vld [vmem:[%s307 + $0x50] sm:$0x1]
        %v347 = vld [vmem:[%s307 + $0x54] sm:$0xf]
        %v348 = vld [vmem:[%s307 + $0x58] sm:$0xf]
        %v349 = vld [vmem:[%s307 + $0x5c] sm:$0x1]
        %v350 = vld [vmem:[%s315] sm:$0xf]
        %v351 = vld [vmem:[%s315 + $0x4] sm:$0xf]
        %v352 = vld [vmem:[%s315 + $0x8] sm:$0x1]
        %v353 = vld [vmem:[%s315 + $0xc] sm:$0xf]
        %v354 = vld [vmem:[%s315 + $0x10] sm:$0xf]
        %v355 = vld [vmem:[%s315 + $0x14] sm:$0x1]
        %v372 = vunpack.c.l.b16 %v326
        %v373 = vunpack.c.l.b16 %v327
        %v374 = vunpack.c.l.b16 %v329
        %v375 = vunpack.c.l.b16 %v330
        %v376 = vunpack.c.l.b16 %v332
        %v377 = vunpack.c.l.b16 %v333
        %v378 = vunpack.c.l.b16 %v335
        %v379 = vunpack.c.l.b16 %v336
        %v380 = vunpack.c.l.b16 %v338
        %v381 = vunpack.c.l.b16 %v339
        %v382 = vunpack.c.l.b16 %v341
        %v383 = vunpack.c.l.b16 %v342
        %v384 = vunpack.c.l.b16 %v344
        %v385 = vunpack.c.l.b16 %v345
        %v386 = vunpack.c.l.b16 %v347
        %v387 = vunpack.c.l.b16 %v348
        %v388 = vpack.c.b16 %v373, %v372
        %v389 = vpack.c.b16 %v375, %v374
        %v390 = vpack.c.b16 %v377, %v376
        %v391 = vpack.c.b16 %v379, %v378
        %v392 = vpack.c.b16 %v381, %v380
        %v393 = vpack.c.b16 %v383, %v382
        %v394 = vpack.c.b16 %v385, %v384
        %v395 = vpack.c.b16 %v387, %v386
        %v404 = vunpack.c.l.b16 %v328
        %v405 = vunpack.c.l.b16 %v331
        %v406 = vunpack.c.l.b16 %v334
        %v407 = vunpack.c.l.b16 %v337
        %v408 = vunpack.c.l.b16 %v340
        %v409 = vunpack.c.l.b16 %v343
        %v410 = vunpack.c.l.b16 %v346
        %v411 = vunpack.c.l.b16 %v349
        %v412 = vpack.c.b16 %v404, %v404
        %v413 = vpack.c.b16 %v405, %v405
        %v414 = vpack.c.b16 %v406, %v406
        %v415 = vpack.c.b16 %v407, %v407
        %v416 = vpack.c.b16 %v408, %v408
        %v417 = vpack.c.b16 %v409, %v409
        %v418 = vpack.c.b16 %v410, %v410
        %v419 = vpack.c.b16 %v411, %v411
        %vm420 = vsmask.f32 7424
        %v422 = vshrl.u32 %v388, 16
        %v424 = vshll.u32 %v388, 16
        %v426 = vrot.slane %v424, 1
        %v427 = vor.u32 %v422, %v426
        %v429 = vshll.u32 %v412, 16
        %v431 = vrot.slane %v429, 1
        %v432 = vsel %vm420, %v427, %v431
        %v434 = vshrl.u32 %v389, 16
        %v436 = vshll.u32 %v389, 16
        %v438 = vrot.slane %v436, 1
        %v439 = vor.u32 %v434, %v438
        %v441 = vshll.u32 %v413, 16
        %v443 = vrot.slane %v441, 1
        %v444 = vsel %vm420, %v439, %v443
        %v446 = vshrl.u32 %v390, 16
        %v448 = vshll.u32 %v390, 16
        %v450 = vrot.slane %v448, 1
        %v451 = vor.u32 %v446, %v450
        %v453 = vshll.u32 %v414, 16
        %v455 = vrot.slane %v453, 1
        %v456 = vsel %vm420, %v451, %v455
        %v458 = vshrl.u32 %v391, 16
        %v460 = vshll.u32 %v391, 16
        %v462 = vrot.slane %v460, 1
        %v463 = vor.u32 %v458, %v462
        %v465 = vshll.u32 %v415, 16
        %v467 = vrot.slane %v465, 1
        %v468 = vsel %vm420, %v463, %v467
        %v470 = vshrl.u32 %v392, 16
        %v472 = vshll.u32 %v392, 16
        %v474 = vrot.slane %v472, 1
        %v475 = vor.u32 %v470, %v474
        %v477 = vshll.u32 %v416, 16
        %v479 = vrot.slane %v477, 1
        %v480 = vsel %vm420, %v475, %v479
        %v482 = vshrl.u32 %v393, 16
        %v484 = vshll.u32 %v393, 16
        %v486 = vrot.slane %v484, 1
        %v487 = vor.u32 %v482, %v486
        %v489 = vshll.u32 %v417, 16
        %v491 = vrot.slane %v489, 1
        %v492 = vsel %vm420, %v487, %v491
        %v494 = vshrl.u32 %v394, 16
        %v496 = vshll.u32 %v394, 16
        %v498 = vrot.slane %v496, 1
        %v499 = vor.u32 %v494, %v498
        %v501 = vshll.u32 %v418, 16
        %v503 = vrot.slane %v501, 1
        %v504 = vsel %vm420, %v499, %v503
        %v506 = vshrl.u32 %v395, 16
        %v508 = vshll.u32 %v395, 16
        %v510 = vrot.slane %v508, 1
        %v511 = vor.u32 %v506, %v510
        %v513 = vshll.u32 %v419, 16
        %v515 = vrot.slane %v513, 1
        %v516 = vsel %vm420, %v511, %v515
        %517 = vrot.lane.b32.xlu0 %v432, 4
        %v518 = vpop.permute.xlu0 %517
        %519 = vrot.lane.b32.xlu0 %v444, 4
        %v520 = vpop.permute.xlu0 %519
        %521 = vrot.lane.b32.xlu0 %v456, 4
        %v522 = vpop.permute.xlu0 %521
        %523 = vrot.lane.b32.xlu0 %v468, 4
        %v524 = vpop.permute.xlu0 %523
        %525 = vrot.lane.b32.xlu0 %v480, 4
        %v526 = vpop.permute.xlu0 %525
        %527 = vrot.lane.b32.xlu0 %v492, 4
        %v528 = vpop.permute.xlu0 %527
        %529 = vrot.lane.b32.xlu0 %v504, 4
        %v530 = vpop.permute.xlu0 %529
        %531 = vrot.lane.b32.xlu0 %v516, 4
        %v532 = vpop.permute.xlu0 %531
        %vm533 = vcmask 1046528
        %v534 = vrot.slane %v388, 1
        %v535 = vrot.slane %v412, 1
        %v536 = vsel %vm533, %v534, %v535
        %v537 = vrot.slane %v389, 1
        %v538 = vrot.slane %v413, 1
        %v539 = vsel %vm533, %v537, %v538
        %v540 = vrot.slane %v390, 1
        %v541 = vrot.slane %v414, 1
        %v542 = vsel %vm533, %v540, %v541
        %v543 = vrot.slane %v391, 1
        %v544 = vrot.slane %v415, 1
        %v545 = vsel %vm533, %v543, %v544
        %v546 = vrot.slane %v392, 1
        %v547 = vrot.slane %v416, 1
        %v548 = vsel %vm533, %v546, %v547
        %v549 = vrot.slane %v393, 1
        %v550 = vrot.slane %v417, 1
        %v551 = vsel %vm533, %v549, %v550
        %v552 = vrot.slane %v394, 1
        %v553 = vrot.slane %v418, 1
        %v554 = vsel %vm533, %v552, %v553
        %v555 = vrot.slane %v395, 1
        %v556 = vrot.slane %v419, 1
        %v557 = vsel %vm533, %v555, %v556
        %558 = vrot.lane.b32.xlu0 %v536, 8
        %v559 = vpop.permute.xlu0 %558
        %560 = vrot.lane.b32.xlu0 %v539, 8
        %v561 = vpop.permute.xlu0 %560
        %562 = vrot.lane.b32.xlu0 %v542, 8
        %v563 = vpop.permute.xlu0 %562
        %564 = vrot.lane.b32.xlu0 %v545, 8
        %v565 = vpop.permute.xlu0 %564
        %566 = vrot.lane.b32.xlu0 %v548, 8
        %v567 = vpop.permute.xlu0 %566
        %568 = vrot.lane.b32.xlu0 %v551, 8
        %v569 = vpop.permute.xlu0 %568
        %570 = vrot.lane.b32.xlu0 %v554, 8
        %v571 = vpop.permute.xlu0 %570
        %572 = vrot.lane.b32.xlu0 %v557, 8
        %v573 = vpop.permute.xlu0 %572
        %v576 = vunpack.c.l.b16 %v350
        %v577 = vunpack.c.l.b16 %v351
        %v578 = vpack.c.b16 %v577, %v576
        %579 = vrot.lane.b32.xlu0 %v389, 12
        %v580 = vpop.permute.xlu0 %579
        %581 = vrot.lane.b32.xlu0 %v390, 12
        %v582 = vpop.permute.xlu0 %581
        %583 = vrot.lane.b32.xlu0 %v391, 12
        %v584 = vpop.permute.xlu0 %583
        %585 = vrot.lane.b32.xlu0 %v392, 12
        %v586 = vpop.permute.xlu0 %585
        %587 = vrot.lane.b32.xlu0 %v393, 12
        %v588 = vpop.permute.xlu0 %587
        %589 = vrot.lane.b32.xlu0 %v394, 12
        %v590 = vpop.permute.xlu0 %589
        %591 = vrot.lane.b32.xlu0 %v395, 12
        %v592 = vpop.permute.xlu0 %591
        %593 = vrot.lane.b32.xlu0 %v578, 12
        %v594 = vpop.permute.xlu0 %593
        %v596 = vunpack.c.l.b16 %v352
        %v597 = vpack.c.b16 %v596, %v596
        %v599 = vshrl.u32 %v578, 16
        %v601 = vshll.u32 %v578, 16
        %v603 = vrot.slane %v601, 1
        %v604 = vor.u32 %v599, %v603
        %v606 = vshll.u32 %v597, 16
        %v608 = vrot.slane %v606, 1
        %v609 = vsel %vm420, %v604, %v608
        %610 = vrot.lane.b32.xlu0 %v444, 16
        %v611 = vpop.permute.xlu0 %610
        %612 = vrot.lane.b32.xlu0 %v456, 16
        %v613 = vpop.permute.xlu0 %612
        %614 = vrot.lane.b32.xlu0 %v468, 16
        %v615 = vpop.permute.xlu0 %614
        %616 = vrot.lane.b32.xlu0 %v480, 16
        %v617 = vpop.permute.xlu0 %616
        %618 = vrot.lane.b32.xlu0 %v492, 16
        %v619 = vpop.permute.xlu0 %618
        %620 = vrot.lane.b32.xlu0 %v504, 16
        %v621 = vpop.permute.xlu0 %620
        %622 = vrot.lane.b32.xlu0 %v516, 16
        %v623 = vpop.permute.xlu0 %622
        %624 = vrot.lane.b32.xlu0 %v609, 16
        %v625 = vpop.permute.xlu0 %624
        %v626 = vrot.slane %v578, 1
        %v627 = vrot.slane %v597, 1
        %v628 = vsel %vm533, %v626, %v627
        %629 = vrot.lane.b32.xlu0 %v539, 20
        %v630 = vpop.permute.xlu0 %629
        %631 = vrot.lane.b32.xlu0 %v542, 20
        %v632 = vpop.permute.xlu0 %631
        %633 = vrot.lane.b32.xlu0 %v545, 20
        %v634 = vpop.permute.xlu0 %633
        %635 = vrot.lane.b32.xlu0 %v548, 20
        %v636 = vpop.permute.xlu0 %635
        %637 = vrot.lane.b32.xlu0 %v551, 20
        %v638 = vpop.permute.xlu0 %637
        %639 = vrot.lane.b32.xlu0 %v554, 20
        %v640 = vpop.permute.xlu0 %639
        %641 = vrot.lane.b32.xlu0 %v557, 20
        %v642 = vpop.permute.xlu0 %641
        %643 = vrot.lane.b32.xlu0 %v628, 20
        %v644 = vpop.permute.xlu0 %643
        %v647 = vunpack.c.l.b16 %v353
        %v648 = vunpack.c.l.b16 %v354
        %v649 = vpack.c.b16 %v648, %v647
        %650 = vrot.lane.b32.xlu0 %v390, 24
        %v651 = vpop.permute.xlu0 %650
        %652 = vrot.lane.b32.xlu0 %v391, 24
        %v653 = vpop.permute.xlu0 %652
        %654 = vrot.lane.b32.xlu0 %v392, 24
        %v655 = vpop.permute.xlu0 %654
        %656 = vrot.lane.b32.xlu0 %v393, 24
        %v657 = vpop.permute.xlu0 %656
        %658 = vrot.lane.b32.xlu0 %v394, 24
        %v659 = vpop.permute.xlu0 %658
        %660 = vrot.lane.b32.xlu0 %v395, 24
        %v661 = vpop.permute.xlu0 %660
        %662 = vrot.lane.b32.xlu0 %v578, 24
        %v663 = vpop.permute.xlu0 %662
        %664 = vrot.lane.b32.xlu0 %v649, 24
        %v665 = vpop.permute.xlu0 %664
        %v667 = vunpack.c.l.b16 %v355
        %v668 = vpack.c.b16 %v667, %v667
        %v670 = vshrl.u32 %v649, 16
        %v672 = vshll.u32 %v649, 16
        %v674 = vrot.slane %v672, 1
        %v675 = vor.u32 %v670, %v674
        %v677 = vshll.u32 %v668, 16
        %v679 = vrot.slane %v677, 1
        %v680 = vsel %vm420, %v675, %v679
        %681 = vrot.lane.b32.xlu0 %v456, 28
        %v682 = vpop.permute.xlu0 %681
        %683 = vrot.lane.b32.xlu0 %v468, 28
        %v684 = vpop.permute.xlu0 %683
        %685 = vrot.lane.b32.xlu0 %v480, 28
        %v686 = vpop.permute.xlu0 %685
        %687 = vrot.lane.b32.xlu0 %v492, 28
        %v688 = vpop.permute.xlu0 %687
        %689 = vrot.lane.b32.xlu0 %v504, 28
        %v690 = vpop.permute.xlu0 %689
        %691 = vrot.lane.b32.xlu0 %v516, 28
        %v692 = vpop.permute.xlu0 %691
        %693 = vrot.lane.b32.xlu0 %v609, 28
        %v694 = vpop.permute.xlu0 %693
        %695 = vrot.lane.b32.xlu0 %v680, 28
        %v696 = vpop.permute.xlu0 %695
        %v697 = vrot.slane %v649, 1
        %v698 = vrot.slane %v668, 1
        %v699 = vsel %vm533, %v697, %v698
        %700 = vrot.lane.b32.xlu0 %v542, 32
        %v701 = vpop.permute.xlu0 %700
        %702 = vrot.lane.b32.xlu0 %v545, 32
        %v703 = vpop.permute.xlu0 %702
        %704 = vrot.lane.b32.xlu0 %v548, 32
        %v705 = vpop.permute.xlu0 %704
        %706 = vrot.lane.b32.xlu0 %v551, 32
        %v707 = vpop.permute.xlu0 %706
        %708 = vrot.lane.b32.xlu0 %v554, 32
        %v709 = vpop.permute.xlu0 %708
        %710 = vrot.lane.b32.xlu0 %v557, 32
        %v711 = vpop.permute.xlu0 %710
        %712 = vrot.lane.b32.xlu0 %v628, 32
        %v713 = vpop.permute.xlu0 %712
        %714 = vrot.lane.b32.xlu0 %v699, 32
        %v715 = vpop.permute.xlu0 %714
        %vm716 = vcmask 31744
        %v718 = vsel %vm716, %v388, %v518
        %v720 = vsel %vm716, %v389, %v520
        %v722 = vsel %vm716, %v390, %v522
        %v724 = vsel %vm716, %v391, %v524
        %v726 = vsel %vm716, %v392, %v526
        %v728 = vsel %vm716, %v393, %v528
        %v730 = vsel %vm716, %v394, %v530
        %v732 = vsel %vm716, %v395, %v532
        %vm733 = vcmask 64512
        %v735 = vsel %vm733, %v718, %v559
        %v737 = vsel %vm733, %v720, %v561
        %v739 = vsel %vm733, %v722, %v563
        %v741 = vsel %vm733, %v724, %v565
        %v743 = vsel %vm733, %v726, %v567
        %v745 = vsel %vm733, %v728, %v569
        %v747 = vsel %vm733, %v730, %v571
        %v749 = vsel %vm733, %v732, %v573
        %vm750 = vcmask 97280
        %v752 = vsel %vm750, %v735, %v580
        %v754 = vsel %vm750, %v737, %v582
        %v756 = vsel %vm750, %v739, %v584
        %v758 = vsel %vm750, %v741, %v586
        %v760 = vsel %vm750, %v743, %v588
        %v762 = vsel %vm750, %v745, %v590
        %v764 = vsel %vm750, %v747, %v592
        %v766 = vsel %vm750, %v749, %v594
        %vm767 = vcmask 130048
        %v769 = vsel %vm767, %v752, %v611
        %v771 = vsel %vm767, %v754, %v613
        %v773 = vsel %vm767, %v756, %v615
        %v775 = vsel %vm767, %v758, %v617
        %v777 = vsel %vm767, %v760, %v619
        %v779 = vsel %vm767, %v762, %v621
        %v781 = vsel %vm767, %v764, %v623
        %v783 = vsel %vm767, %v766, %v625
        %vm784 = vcmask 162816
        %v786 = vsel %vm784, %v769, %v630
        %v788 = vsel %vm784, %v771, %v632
        %v790 = vsel %vm784, %v773, %v634
        %v792 = vsel %vm784, %v775, %v636
        %v794 = vsel %vm784, %v777, %v638
        %v796 = vsel %vm784, %v779, %v640
        %v798 = vsel %vm784, %v781, %v642
        %v800 = vsel %vm784, %v783, %v644
        %vm801 = vcmask 195584
        %v803 = vsel %vm801, %v786, %v651
        %v805 = vsel %vm801, %v788, %v653
        %v807 = vsel %vm801, %v790, %v655
        %v809 = vsel %vm801, %v792, %v657
        %v811 = vsel %vm801, %v794, %v659
        %v813 = vsel %vm801, %v796, %v661
        %v815 = vsel %vm801, %v798, %v663
        %v817 = vsel %vm801, %v800, %v665
        %vm818 = vcmask 228352
        %v820 = vsel %vm818, %v803, %v682
        %v822 = vsel %vm818, %v805, %v684
        %v824 = vsel %vm818, %v807, %v686
        %v826 = vsel %vm818, %v809, %v688
        %v828 = vsel %vm818, %v811, %v690
        %v830 = vsel %vm818, %v813, %v692
        %v832 = vsel %vm818, %v815, %v694
        %v834 = vsel %vm818, %v817, %v696
        %vm835 = vcmask 261120
        %v837 = vsel %vm835, %v820, %v701
        %v839 = vsel %vm835, %v822, %v703
        %v841 = vsel %vm835, %v824, %v705
        %v843 = vsel %vm835, %v826, %v707
        %v845 = vsel %vm835, %v828, %v709
        %v847 = vsel %vm835, %v830, %v711
        %v849 = vsel %vm835, %v832, %v713
        %v851 = vsel %vm835, %v834, %v715
        %v852 = vld [vmem:[%s2] sm:$0xf]
        %v853 = vld [vmem:[%s2 + $0x4] sm:$0xf]
        %v854 = vld [vmem:[%s2 + $0x8] sm:$0xf]
        %v855 = vld [vmem:[%s2 + $0xc] sm:$0xf]
        %v856 = vld [vmem:[%s2 + $0x10] sm:$0x3]
        %v862 = vunpack.c.l.b16 %v852
        %v863 = vunpack.c.l.b16 %v853
        %v864 = vunpack.c.l.b16 %v854
        %v865 = vunpack.c.l.b16 %v855
        %v866 = vunpack.c.l.b16 %v856
        %v867 = vpack.c.b16 %v863, %v862
        %v868 = vpack.c.b16 %v865, %v864
        %v869 = vpack.c.b16 %v866, %v866
        %vm872 = vcmask 293888
        %v873 = vsel %vm872, %v837, 0
        %v875 = vsel %vm872, %v839, 0
        %v877 = vsel %vm872, %v841, 0
        %v879 = vsel %vm872, %v843, 0
        %v881 = vsel %vm872, %v845, 0
        %v883 = vsel %vm872, %v847, 0
        %v885 = vsel %vm872, %v849, 0
        %v887 = vsel %vm872, %v851, 0
        %vm889 = vcmask 1041408
        %v891 = vsel %vm889, %v869, 0
        %893 = vmatpush.bf16.msra.mxu0 0
        %894 = vmatpush.bf16.msra.mxu0 0
        %895 = vmatpush.bf16.msra.mxu0 0
        %896 = vmatpush.bf16.msra.mxu0 0
        %897 = vmatpush.bf16.msra.mxu0 0
        %898 = vmatpush.bf16.msra.mxu0 %v891
        %899 = vmatpush.bf16.msra.mxu0 %v868
        %900 = vmatpush.bf16.msra.mxu0 %v867
        %901 = vmatmul.bf16.gmra.mxu0 %v873
        %v902 = vpop.f32.mrf.mxu0
        %v903 = vadd.f32 0.0, %v902
        %v904 = vpop.f32.mrf.mxu0
        %v905 = vadd.f32 0.0, %v904
        %906 = vmatmul.bf16.gmra.mxu0 %v875
        %v907 = vpop.f32.mrf.mxu0
        %v908 = vadd.f32 0.0, %v907
        %v909 = vpop.f32.mrf.mxu0
        %v910 = vadd.f32 0.0, %v909
        %911 = vmatmul.bf16.gmra.mxu0 %v877
        %v912 = vpop.f32.mrf.mxu0
        %v913 = vadd.f32 0.0, %v912
        %v914 = vpop.f32.mrf.mxu0
        %v915 = vadd.f32 0.0, %v914
        %916 = vmatmul.bf16.gmra.mxu0 %v879
        %v917 = vpop.f32.mrf.mxu0
        %v918 = vadd.f32 0.0, %v917
        %v919 = vpop.f32.mrf.mxu0
        %v920 = vadd.f32 0.0, %v919
        %921 = vmatmul.bf16.gmra.mxu0 %v881
        %v922 = vpop.f32.mrf.mxu0
        %v923 = vadd.f32 0.0, %v922
        %v924 = vpop.f32.mrf.mxu0
        %v925 = vadd.f32 0.0, %v924
        %926 = vmatmul.bf16.gmra.mxu0 %v883
        %v927 = vpop.f32.mrf.mxu0
        %v928 = vadd.f32 0.0, %v927
        %v929 = vpop.f32.mrf.mxu0
        %v930 = vadd.f32 0.0, %v929
        %931 = vmatmul.bf16.gmra.mxu0 %v885
        %v932 = vpop.f32.mrf.mxu0
        %v933 = vadd.f32 0.0, %v932
        %v934 = vpop.f32.mrf.mxu0
        %v935 = vadd.f32 0.0, %v934
        %936 = vmatmul.bf16.gmra.mxu0 %v887
        %v937 = vpop.f32.mrf.mxu0
        %v938 = vadd.f32 0.0, %v937
        %v939 = vpop.f32.mrf.mxu0
        %v940 = vadd.f32 0.0, %v939
        %941 = vdwg.mxu0
        %v942 = vpack.c.bf16 %v903, %v903
        %v943 = vpack.c.bf16 %v905, %v905
        %v944 = vpack.c.bf16 %v908, %v908
        %v945 = vpack.c.bf16 %v910, %v910
        %v946 = vpack.c.bf16 %v913, %v913
        %v947 = vpack.c.bf16 %v915, %v915
        %v948 = vpack.c.bf16 %v918, %v918
        %v949 = vpack.c.bf16 %v920, %v920
        %v950 = vpack.c.bf16 %v923, %v923
        %v951 = vpack.c.bf16 %v925, %v925
        %v952 = vpack.c.bf16 %v928, %v928
        %v953 = vpack.c.bf16 %v930, %v930
        %v954 = vpack.c.bf16 %v933, %v933
        %v955 = vpack.c.bf16 %v935, %v935
        %v956 = vpack.c.bf16 %v938, %v938
        %v957 = vpack.c.bf16 %v940, %v940
        %958 = vst [vmem:[%s283] sm:$0xf] %v942
        %959 = vst [vmem:[%s283 + $0x4] sm:$0xf] %v943
        %960 = vst [vmem:[%s283 + $0x8] sm:$0xf] %v944
        %961 = vst [vmem:[%s283 + $0xc] sm:$0xf] %v945
        %962 = vst [vmem:[%s283 + $0x10] sm:$0xf] %v946
        %963 = vst [vmem:[%s283 + $0x14] sm:$0xf] %v947
        %964 = vst [vmem:[%s283 + $0x18] sm:$0xf] %v948
        %965 = vst [vmem:[%s283 + $0x1c] sm:$0xf] %v949
        %966 = vst [vmem:[%s283 + $0x20] sm:$0xf] %v950
        %967 = vst [vmem:[%s283 + $0x24] sm:$0xf] %v951
        %968 = vst [vmem:[%s283 + $0x28] sm:$0xf] %v952
        %969 = vst [vmem:[%s283 + $0x2c] sm:$0xf] %v953
        %970 = vst [vmem:[%s283 + $0x30] sm:$0xf] %v954
        %971 = vst [vmem:[%s283 + $0x34] sm:$0xf] %v955
        %972 = vst [vmem:[%s283 + $0x38] sm:$0xf] %v956
        %973 = vst [vmem:[%s283 + $0x3c] sm:$0xf] %v957
        %v974 = vadd.f32 %v903, %v905
        %v975 = vadd.f32 %v974, %v908
        %v976 = vadd.f32 %v975, %v910
        %v977 = vadd.f32 %v976, %v913
        %v978 = vadd.f32 %v977, %v915
        %v979 = vadd.f32 %v978, %v918
        %v980 = vadd.f32 %v979, %v920
        %v981 = vadd.f32 %v980, %v923
        %v982 = vadd.f32 %v981, %v925
        %v983 = vadd.f32 %v982, %v928
        %v984 = vadd.f32 %v983, %v930
        %v985 = vadd.f32 %v984, %v933
        %v986 = vadd.f32 %v985, %v935
        %v987 = vadd.f32 %v986, %v938
        %v988 = vadd.f32 %v987, %v940
        %v989 = vrot.slane %v988, 4
        %v990 = vadd.f32 %v988, %v989
        %v991 = vrot.slane %v990, 2
        %v992 = vadd.f32 %v990, %v991
        %v993 = vrot.slane %v992, 1
        %v994 = vadd.f32 %v992, %v993
        %v995 = vmul.f32 %v903, %v903
        %v996 = vmul.f32 %v905, %v905
        %v997 = vmul.f32 %v908, %v908
        %v998 = vmul.f32 %v910, %v910
        %v999 = vmul.f32 %v913, %v913
        %v1000 = vmul.f32 %v915, %v915
        %v1001 = vmul.f32 %v918, %v918
        %v1002 = vmul.f32 %v920, %v920
        %v1003 = vmul.f32 %v923, %v923
        %v1004 = vmul.f32 %v925, %v925
        %v1005 = vmul.f32 %v928, %v928
        %v1006 = vmul.f32 %v930, %v930
        %v1007 = vmul.f32 %v933, %v933
        %v1008 = vmul.f32 %v935, %v935
        %v1009 = vmul.f32 %v938, %v938
        %v1010 = vmul.f32 %v940, %v940
        %v1011 = vadd.f32 %v995, %v996
        %v1012 = vadd.f32 %v1011, %v997
        %v1013 = vadd.f32 %v1012, %v998
        %v1014 = vadd.f32 %v1013, %v999
        %v1015 = vadd.f32 %v1014, %v1000
        %v1016 = vadd.f32 %v1015, %v1001
        %v1017 = vadd.f32 %v1016, %v1002
        %v1018 = vadd.f32 %v1017, %v1003
        %v1019 = vadd.f32 %v1018, %v1004
        %v1020 = vadd.f32 %v1019, %v1005
        %v1021 = vadd.f32 %v1020, %v1006
        %v1022 = vadd.f32 %v1021, %v1007
        %v1023 = vadd.f32 %v1022, %v1008
        %v1024 = vadd.f32 %v1023, %v1009
        %v1025 = vadd.f32 %v1024, %v1010
        %v1026 = vrot.slane %v1025, 4
        %v1027 = vadd.f32 %v1025, %v1026
        %v1028 = vrot.slane %v1027, 2
        %v1029 = vadd.f32 %v1027, %v1028
        %v1030 = vrot.slane %v1029, 1
        %v1031 = vadd.f32 %v1029, %v1030
        %1032 = vst [vmem:[%s290] sm:$0xff] %v994
        %1033 = vst [vmem:[%s297] sm:$0xff] %v1031
        %s1034 = sand.u32 %s126, 1
        %s1035 = scalar_lea.sflag [#allocation3], %s1034
        %s1036 = sand.u32 %s126, 1
        %s1037 = smul.addr %s1036, 64
        %s1038 = scalar_lea.vmem [#allocation2], %s1037
        %s1039 = sand.u32 %s23, 1
        %s1040 = scalar_lea.sflag [#allocation5], %s1039
        %s1041 = sand.u32 %s156, 1
        %s1042 = smul.addr %s1041, 8
        %s1043 = scalar_lea.vmem [#allocation4], %s1042
        %s1044 = sand.u32 %s23, 1
        %s1045 = scalar_lea.sflag [#allocation5], %s1044
        %s1046 = sand.u32 %s186, 1
        %s1047 = smul.addr %s1046, 8
        %s1048 = scalar_lea.vmem [#allocation6], %s1047
        // Predicated region
        $region33: #{tpu_custom_call.1} parent=31 // pred_check
          %p1049 = pneg %p136
        $region34: #{tpu_custom_call.1} parent=31 // pred_check_branch
          %1051 = sbr.rel (%p1049) target = $region36
        $region35: #{tpu_custom_call.1} parent=31 // pred_region
          %s1052 = smul.u32 %s27, 2
          %s1053 = sadd.s32 %s1052, %s28
          %s1054 = smul.u32 16, %s1053
          %1056 = vsyncadd %s1035, 0
          %s1057 = smul.addr %s1054, 4
          %s1058 = scalar_lea.hbm %s3, %s1057
          %s1059 = sshll.u32 %s1038, 4
          %s1060 = int_to_ptr.vmem [resolvable:$true] %s1059
          %s1061 = sshll.u32 %s1058, 4
          %s1062 = int_to_ptr.hbm [resolvable:$true] %s1061
          %1067 = dma.vmem_to_hbm [thread:$0]  %s1060, 1024, %s1062, %s1035, 64, 64, 4
        $region36: #{tpu_custom_call.1} parent=31 // pred_fallthru
          _
        // Predicated region
        $region37: #{tpu_custom_call.1} parent=31 // pred_check
          %p1068 = pneg %p166
        $region38: #{tpu_custom_call.1} parent=31 // pred_check_branch
          %1070 = sbr.rel (%p1068) target = $region40
        $region39: #{tpu_custom_call.1} parent=31 // pred_region
          %s1071 = smul.u32 %s27, 2
          %s1072 = sadd.s32 %s1071, %s28
          %1074 = vsyncadd %s1040, 0
          %s1075 = smul.addr %s1072, 8
          %s1076 = scalar_lea.hbm %s4, %s1075
          %s1078 = sshll.u32 %s1043, 4
          %s1079 = int_to_ptr.vmem [resolvable:$true] %s1078
          %s1080 = sshll.u32 %s1076, 4
          %s1081 = int_to_ptr.hbm [resolvable:$true] %s1080
          %1083 = dma.vmem_to_hbm [thread:$0]  %s1079, 128, %s1081, %s1040
        $region40: #{tpu_custom_call.1} parent=31 // pred_fallthru
          _
        // Predicated region
        $region41: #{tpu_custom_call.1} parent=31 // pred_check
          %p1084 = pneg %p196
        $region42: #{tpu_custom_call.1} parent=31 // pred_check_branch
          %1086 = sbr.rel (%p1084) target = $region44
        $region43: #{tpu_custom_call.1} parent=31 // pred_region
          %s1087 = smul.u32 %s27, 2
          %s1088 = sadd.s32 %s1087, %s28
          %1090 = vsyncadd %s1045, 0
          %s1091 = smul.addr %s1088, 8
          %s1092 = scalar_lea.hbm %s5, %s1091
          %s1094 = sshll.u32 %s1048, 4
          %s1095 = int_to_ptr.vmem [resolvable:$true] %s1094
          %s1096 = sshll.u32 %s1092, 4
          %s1097 = int_to_ptr.hbm [resolvable:$true] %s1096
          %1099 = dma.vmem_to_hbm [thread:$0]  %s1095, 128, %s1097, %s1045
        $region44: #{tpu_custom_call.1} parent=31 // pred_fallthru
          _
      $region32: #{tpu_custom_call.1} parent=5 // pred_fallthru
        _
      %p1100 = scmp.le.s32.totalorder 2, %s18
      // Predicated region
      $region45: #{tpu_custom_call.1} parent=5 // pred_check
        %p1101 = pneg %p1100
      $region46: #{tpu_custom_call.1} parent=5 // pred_check_branch
        %1103 = sbr.rel (%p1101) target = $region48
      $region47: #{tpu_custom_call.1} parent=5 // pred_region
        %s1104 = ssub.s32 %s18, 2
        // Predicated region
        $region49: #{tpu_custom_call.1} parent=47 // pred_check
          %p1105 = pneg %p142
        $region50: #{tpu_custom_call.1} parent=47 // pred_check_branch
          %1107 = sbr.rel (%p1105) target = $region52
        $region51: #{tpu_custom_call.1} parent=47 // pred_region
          %s1108 = sand.u32 %s127, 1
          %s1109 = scalar_lea.sflag [#allocation3], %s1108
          %s1110 = sand.u32 %s127, 1
          %s1111 = smul.addr %s1110, 64
          %s1112 = scalar_lea.vmem [#allocation2], %s1111
          %1114 = dma.done %s1109, 1024
        $region52: #{tpu_custom_call.1} parent=47 // pred_fallthru
          _
        // Predicated region
        $region53: #{tpu_custom_call.1} parent=47 // pred_check
          %p1115 = pneg %p172
        $region54: #{tpu_custom_call.1} parent=47 // pred_check_branch
          %1117 = sbr.rel (%p1115) target = $region56
        $region55: #{tpu_custom_call.1} parent=47 // pred_region
          %s1118 = sand.u32 %s24, 1
          %s1119 = scalar_lea.sflag [#allocation5], %s1118
          %s1120 = sand.u32 %s157, 1
          %s1121 = smul.addr %s1120, 8
          %s1122 = scalar_lea.vmem [#allocation4], %s1121
          %1124 = dma.done %s1119, 128
        $region56: #{tpu_custom_call.1} parent=47 // pred_fallthru
          _
        // Predicated region
        $region57: #{tpu_custom_call.1} parent=47 // pred_check
          %p1125 = pneg %p202
        $region58: #{tpu_custom_call.1} parent=47 // pred_check_branch
          %1127 = sbr.rel (%p1125) target = $region60
        $region59: #{tpu_custom_call.1} parent=47 // pred_region
          %s1128 = sand.u32 %s24, 1
          %s1129 = scalar_lea.sflag [#allocation5], %s1128
          %s1130 = sand.u32 %s187, 1
          %s1131 = smul.addr %s1130, 8
          %s1132 = scalar_lea.vmem [#allocation6], %s1131
          %1134 = dma.done %s1129, 128
        $region60: #{tpu_custom_call.1} parent=47 // pred_fallthru
          _
      $region48: #{tpu_custom_call.1} parent=5 // pred_fallthru
        _
    $region6: #{tpu_custom_call.1} parent=1 // loop_footer
      %s22 = sadd.s32 1, %s18
    $region7: #{tpu_custom_call.1} parent=1 // loop_footer_branch
      %17 = sbr.rel target = $region3
    $region8: #{tpu_custom_call.1} parent=1 // loop_exit
      _
    %1135 = vsyncpa [#allocation3], 1
    %s1136 = scalar_lea.sflag [#allocation3], 1
    %1137 = vsyncpa %s1136, 1
    %1138 = vsyncpa [#allocation5], 1
    %s1139 = scalar_lea.sflag [#allocation5], 1
    %1140 = vsyncpa %s1139, 1

</llo_original>
